<compile_context>
chip_gen: v7x
topology: tpu7x:2x2x1
jax: 0.10.0
libtpu: 0.0.40
codegen_flags: <defaults>
</compile_context>

<pallas_src>
from functools import partial

import jax
import jax.numpy as jnp
from jax import lax
from jax.experimental import pallas as pl
from jax.experimental.pallas import tpu as pltpu


# ----------------------------------------------------------------------------
# One-time parameter preparation (NOT in the per-step hot path).
# ----------------------------------------------------------------------------
def prepare_worker_params(W_phi, W_ih, W_hh, b_ih, b_hh, W_v, b_v,
                          *, k, num_outputs, param_dtype=jnp.float32):
    """Pre-transpose / fuse / pad the Worker parameters.

    Returns a dict of arrays:
      w_zh_T     [d+H, 4H]  fused transposed LSTM weight  ([W_ih ; W_hh]^T)
      bias       [1, 4H]    b_ih + b_hh (folded once)
      wphi_rep_T [d, H]     phi weight with each row repeated num_outputs
                            times, transposed:  (g @ wphi_rep_T)[m] == w[m//no]
      svh        [H, PV]    0/1 selection matrix, lane padded:
                            (w_rep * h) @ svh  ==  w @ h.reshape(k, no)
      wv         [1, H]     value-head weight row, bv [1, 1] value bias
    """
    hidden = num_outputs * k
    d = W_phi.shape[1]
    assert W_ih.shape == (4 * hidden, d)
    assert W_hh.shape == (4 * hidden, hidden)
    assert W_v.shape == (1, hidden)

    pv_width = max(128, ((num_outputs + 1 + 127) // 128) * 128)

    w_zh_T = jnp.concatenate([W_ih, W_hh], axis=1).T.astype(param_dtype)
    bias = (b_ih + b_hh).reshape(1, 4 * hidden).astype(jnp.float32)
    wphi_rep_T = jnp.repeat(W_phi, num_outputs, axis=0).T.astype(param_dtype)

    m = jnp.arange(hidden)
    sel = (m[:, None] % num_outputs == jnp.arange(num_outputs)[None, :])
    svh = (jnp.zeros((hidden, pv_width), jnp.float32)
           .at[:, :num_outputs].set(sel.astype(jnp.float32))
           .astype(param_dtype))
    wv = W_v.reshape(1, hidden).astype(param_dtype)
    bv = b_v.reshape(1, 1).astype(jnp.float32)
    return dict(w_zh_T=w_zh_T, bias=bias, wphi_rep_T=wphi_rep_T,
                svh=svh, wv=wv, bv=bv)


# ----------------------------------------------------------------------------
# Shared in-kernel math (everything after the LSTM pre-activations).
# ----------------------------------------------------------------------------
def _lstm_tail(gates, c, g, wphi_ref, svh_ref, wv_ref, bv_ref,
               *, hidden, num_outputs, pv_width):
    wdt = wphi_ref.dtype
    i_g = jax.nn.sigmoid(gates[:, 0 * hidden:1 * hidden])
    f_g = jax.nn.sigmoid(gates[:, 1 * hidden:2 * hidden])
    g_g = jnp.tanh(gates[:, 2 * hidden:3 * hidden])
    o_g = jax.nn.sigmoid(gates[:, 3 * hidden:4 * hidden])
    c_new = f_g * c + i_g * g_g
    h_new = o_g * jnp.tanh(c_new)                                 # U_flat [1,H]

    # phi, already in U_flat lane layout: w_rep[m] == (sum_g_W @ W_phi^T)[m//no]
    w_rep = jnp.dot(g.astype(wdt), wphi_ref[...],
                    preferred_element_type=jnp.float32)           # [1, H]

    # a[j] = sum_i w[i] * U[i, j]  ==  ((w_rep * h_new) @ svh)[j]   (no relayout)
    aw = (w_rep * h_new).astype(wdt)
    a_row = jnp.dot(aw, svh_ref[...],
                    preferred_element_type=jnp.float32)           # [1, PV]

    # value = U_flat @ W_v^T + b_v   (VPU multiply + cross-lane reduce)
    val = (jnp.sum(h_new * wv_ref[...].astype(jnp.float32),
                   axis=1, keepdims=True) + bv_ref[...])          # [1, 1]

    # Masked softmax over the first num_outputs lanes; pack value into lane
    # `num_outputs` so both fit one lane-dense [1, PV] store.
    lane = lax.broadcasted_iota(jnp.int32, (1, pv_width), 1)
    a_m = jnp.where(lane < num_outputs, a_row, -jnp.inf)
    e = jnp.exp(a_m - jnp.max(a_m, axis=1, keepdims=True))
    probs = e / jnp.sum(e, axis=1, keepdims=True)
    pv = jnp.where(lane == num_outputs, val, probs)
    return h_new, c_new, pv


# ----------------------------------------------------------------------------
# Single-step kernel (fused [1, d+H] x [d+H, 4H] LSTM GEMV).
# ----------------------------------------------------------------------------
def worker_step_kernel(zh_ref, g_ref, c_ref,
                       wzh_ref, bias_ref, wphi_ref, svh_ref, wv_ref, bv_ref,
                       hc_ref, pv_ref,
                       *, hidden, num_outputs, pv_width):
    wdt = wzh_ref.dtype
    gates = jnp.dot(zh_ref[...].astype(wdt), wzh_ref[...],
                    preferred_element_type=jnp.float32) + bias_ref[...]
    h_new, c_new, pv = _lstm_tail(gates, c_ref[...], g_ref[...],
                                  wphi_ref, svh_ref, wv_ref, bv_ref,
                                  hidden=hidden, num_outputs=num_outputs,
                                  pv_width=pv_width)
    hc_ref[0:1, :] = h_new
    hc_ref[1:2, :] = c_new
    pv_ref[...] = pv


@partial(jax.jit, static_argnums=(5,))
def _worker_forward_jit(params, z, g, h, c, num_outputs):
    assert z.shape[0] == 1, "Worker reshape semantics require batch == 1"
    hidden = h.shape[1]
    pv_width = params["svh"].shape[1]

    zh = jnp.concatenate([z, h], axis=1)                          # [1, d+H]
    kernel = partial(worker_step_kernel, hidden=hidden,
                     num_outputs=num_outputs, pv_width=pv_width)
    vmem = pl.BlockSpec(memory_space=pltpu.MemorySpace.VMEM)
    hc, pv = pl.pallas_call(
        kernel,
        out_shape=(jax.ShapeDtypeStruct((2, hidden), jnp.float32),
                   jax.ShapeDtypeStruct((1, pv_width), jnp.float32)),
        in_specs=[vmem] * 9,
        out_specs=(vmem, vmem),
    )(zh, g, c, params["w_zh_T"], params["bias"], params["wphi_rep_T"],
      params["svh"], params["wv"], params["bv"])

    value = pv[:, num_outputs:num_outputs + 1]
    probs = pv[:, :num_outputs]
    return value, probs, (hc[0:1, :], hc[1:2, :])


def worker_forward(params, z, sum_g_W, states_W, reset_value_grad=False,
                   *, num_outputs):
    # reset_value_grad only detaches autograd in the PyTorch module; it has no
    # effect on forward values.
    # TODO(synk): reintroduce detach semantics in a custom VJP if grads are needed.
    del reset_value_grad
    h, c = states_W
    return _worker_forward_jit(params, z, sum_g_W, h, c, num_outputs)


# ----------------------------------------------------------------------------
# Fused T-step rollout kernel: grid=(T,), weights resident in VMEM, h/c carried
# in VMEM scratch across grid iterations.
# ----------------------------------------------------------------------------
def worker_rollout_kernel(z_ref, g_ref, h0_ref, c0_ref,
                          wzh_ref, bias_ref, wphi_ref, svh_ref, wv_ref, bv_ref,
                          hc_ref, pv_ref,
                          h_s, c_s,
                          *, d, hidden, num_outputs, pv_width):
    t = pl.program_id(0)

    @pl.when(t == 0)
    def _():
        h_s[...] = h0_ref[...]
        c_s[...] = c0_ref[...]

    z = z_ref[0]                      # [1, d]
    g = g_ref[0]                      # [1, d]
    h = h_s[...]
    c = c_s[...]
    wdt = wzh_ref.dtype

    gates = (jnp.dot(z.astype(wdt), wzh_ref[0:d, :],
                     preferred_element_type=jnp.float32)
             + jnp.dot(h.astype(wdt), wzh_ref[d:d + hidden, :],
                       preferred_element_type=jnp.float32)
             + bias_ref[...])

    h_new, c_new, pv = _lstm_tail(gates, c, g, wphi_ref, svh_ref, wv_ref,
                                  bv_ref, hidden=hidden,
                                  num_outputs=num_outputs, pv_width=pv_width)
    h_s[...] = h_new
    c_s[...] = c_new
    hc_ref[0:1, 0:1, :] = h_new.reshape(1, 1, hidden)
    hc_ref[0:1, 1:2, :] = c_new.reshape(1, 1, hidden)
    pv_ref[...] = pv.reshape(1, 1, pv_width)


@partial(jax.jit, static_argnums=(5,))
def _worker_rollout_jit(params, z_seq, g_seq, h0, c0, num_outputs):
    assert h0.shape[0] == 1, "Worker reshape semantics require batch == 1"
    T, d = z_seq.shape
    hidden = h0.shape[1]
    pv_width = params["svh"].shape[1]

    z3 = z_seq.reshape(T, 1, d)
    g3 = g_seq.reshape(T, 1, d)

    kernel = partial(worker_rollout_kernel, d=d, hidden=hidden,
                     num_outputs=num_outputs, pv_width=pv_width)

    def const(shape):
        return pl.BlockSpec(shape, lambda t: (0,) * len(shape))

    grid_spec = pltpu.PrefetchScalarGridSpec(
        num_scalar_prefetch=0,
        grid=(T,),
        in_specs=[
            pl.BlockSpec((1, 1, d), lambda t: (t, 0, 0)),        # z_t
            pl.BlockSpec((1, 1, d), lambda t: (t, 0, 0)),        # sum_g_W_t
            const((1, hidden)),                                   # h0
            const((1, hidden)),                                   # c0
            const(params["w_zh_T"].shape),                        # fused LSTM W
            const((1, 4 * hidden)),                               # folded bias
            const(params["wphi_rep_T"].shape),                    # phi (repeated)
            const(params["svh"].shape),                           # selection mat
            const((1, hidden)),                                   # value weight
            const((1, 1)),                                        # value bias
        ],
        out_specs=(
            pl.BlockSpec((1, 2, hidden), lambda t: (t, 0, 0)),    # h/c per step
            pl.BlockSpec((1, 1, pv_width), lambda t: (t, 0, 0)),  # probs+value
        ),
        scratch_shapes=[pltpu.VMEM((1, hidden), jnp.float32),
                        pltpu.VMEM((1, hidden), jnp.float32)],
    )
    hc_seq, pv_seq = pl.pallas_call(
        kernel,
        out_shape=(jax.ShapeDtypeStruct((T, 2, hidden), jnp.float32),
                   jax.ShapeDtypeStruct((T, 1, pv_width), jnp.float32)),
        grid_spec=grid_spec,
        compiler_params=pltpu.CompilerParams(
            dimension_semantics=("arbitrary",)),   # sequential h/c carry
    )(z3, g3, h0, c0, params["w_zh_T"], params["bias"],
      params["wphi_rep_T"], params["svh"], params["wv"], params["bv"])

    values = pv_seq[:, 0, num_outputs:num_outputs + 1]            # [T, 1]
    probs = pv_seq[:, 0, :num_outputs]                            # [T, no]
    h_seq = hc_seq[:, 0, :]
    c_seq = hc_seq[:, 1, :]
    return values, probs, (h_seq, c_seq)


def worker_rollout(params, z_seq, sum_g_W_seq, state0, *, num_outputs):
    h0, c0 = state0
    return _worker_rollout_jit(params, z_seq, sum_g_W_seq, h0, c0, num_outputs)


# ----------------------------------------------------------------------------
# Pure-JAX reference (matches the PyTorch module step for step).
# ----------------------------------------------------------------------------
def _reference_step(z, g, h, c, W_phi, W_ih, W_hh, b_ih, b_hh, W_v, b_v,
                    k, num_outputs):
    hidden = num_outputs * k
    gates = z @ W_ih.T + h @ W_hh.T + b_ih + b_hh
    i_g = jax.nn.sigmoid(gates[:, 0 * hidden:1 * hidden])
    f_g = jax.nn.sigmoid(gates[:, 1 * hidden:2 * hidden])
    g_g = jnp.tanh(gates[:, 2 * hidden:3 * hidden])
    o_g = jax.nn.sigmoid(gates[:, 3 * hidden:4 * hidden])
    c_new = f_g * c + i_g * g_g
    h_new = o_g * jnp.tanh(c_new)
    w = g @ W_phi.T
    a = w @ h_new.reshape(k, num_outputs)
    probs = jax.nn.softmax(a, axis=1)
    value = h_new @ W_v.T + b_v
    return value, probs, h_new, c_new


if __name__ == "__main__":
    B, d, k, num_outputs, T = 1, 32, 16, 8, 8
    hidden = num_outputs * k  # 128

    key = jax.random.PRNGKey(0)
    ks = jax.random.split(key, 13)
    z0 = jax.random.normal(ks[0], (B, d), jnp.float32)
    g0 = jax.random.normal(ks[1], (B, d), jnp.float32)
    h0 = jax.random.uniform(ks[2], (B, hidden), jnp.float32)   # init_state uses rand
    c0 = jax.random.uniform(ks[3], (B, hidden), jnp.float32)

    W_phi = 0.1 * jax.random.normal(ks[4], (k, d), jnp.float32)
    W_ih = 0.1 * jax.random.normal(ks[5], (4 * hidden, d), jnp.float32)
    W_hh = 0.1 * jax.random.normal(ks[6], (4 * hidden, hidden), jnp.float32)
    b_ih = 0.1 * jax.random.normal(ks[7], (4 * hidden,), jnp.float32)
    b_hh = 0.1 * jax.random.normal(ks[8], (4 * hidden,), jnp.float32)
    W_v = 0.1 * jax.random.normal(ks[9], (1, hidden), jnp.float32)
    b_v = 0.1 * jax.random.normal(ks[10], (1,), jnp.float32)

    params = prepare_worker_params(W_phi, W_ih, W_hh, b_ih, b_hh, W_v, b_v,
                                   k=k, num_outputs=num_outputs)

    # ---- single step ----
    value, probs, (h1, c1) = worker_forward(params, z0, g0, (h0, c0), False,
                                            num_outputs=num_outputs)
    jax.block_until_ready((value, probs, h1, c1))

    v_r, p_r, h_r, c_r = _reference_step(z0, g0, h0, c0, W_phi, W_ih, W_hh,
                                         b_ih, b_hh, W_v, b_v, k, num_outputs)
    assert jnp.allclose(value, v_r, atol=1e-4)
    assert jnp.allclose(probs, p_r, atol=1e-4)
    assert jnp.allclose(h1, h_r, atol=1e-4)
    assert jnp.allclose(c1, c_r, atol=1e-4)

    # ---- fused T-step rollout (weights resident in VMEM across steps) ----
    z_seq = jax.random.normal(ks[11], (T, d), jnp.float32)
    g_seq = jax.random.normal(ks[12], (T, d), jnp.float32)
    values, probs_seq, (h_seq, c_seq) = worker_rollout(
        params, z_seq, g_seq, (h0, c0), num_outputs=num_outputs)
    jax.block_until_ready((values, probs_seq, h_seq, c_seq))

    h_t, c_t = h0, c0
    for t in range(T):
        v_r, p_r, h_t, c_t = _reference_step(z_seq[t:t + 1], g_seq[t:t + 1],
                                             h_t, c_t, W_phi, W_ih, W_hh,
                                             b_ih, b_hh, W_v, b_v,
                                             k, num_outputs)
        assert jnp.allclose(values[t:t + 1], v_r, atol=1e-4)
        assert jnp.allclose(probs_seq[t:t + 1], p_r, atol=1e-4)
        assert jnp.allclose(h_seq[t:t + 1], h_t, atol=1e-4)
        assert jnp.allclose(c_seq[t:t + 1], c_t, atol=1e-4)

    # ---- bfloat16-stored weights (halved weight DMA, f32 accumulation) ----
    params_bf16 = prepare_worker_params(W_phi, W_ih, W_hh, b_ih, b_hh, W_v,
                                        b_v, k=k, num_outputs=num_outputs,
                                        param_dtype=jnp.bfloat16)
    v_b, p_b, (h_b, c_b) = worker_forward(params_bf16, z0, g0, (h0, c0),
                                          False, num_outputs=num_outputs)
    jax.block_until_ready((v_b, p_b, h_b, c_b))
    assert jnp.allclose(v_b, v_r if False else value, atol=5e-2)
    assert jnp.allclose(p_b, probs, atol=5e-2)
    assert jnp.allclose(h_b, h1, atol=5e-2)
    assert jnp.allclose(c_b, c1, atol=5e-2)

    print("KERNEL_OK")
</pallas_src>

<mosaic_0001>
module attributes {stable_mosaic.version = 11 : i64} {
  func.func @worker_step_kernel(%arg0: memref<1x160xf32, #tpu.memory_space<vmem>>, %arg1: memref<1x32xf32, #tpu.memory_space<vmem>>, %arg2: memref<1x128xf32, #tpu.memory_space<vmem>>, %arg3: memref<160x512xf32, #tpu.memory_space<vmem>>, %arg4: memref<1x512xf32, #tpu.memory_space<vmem>>, %arg5: memref<32x128xf32, #tpu.memory_space<vmem>>, %arg6: memref<128x128xf32, #tpu.memory_space<vmem>>, %arg7: memref<1x128xf32, #tpu.memory_space<vmem>>, %arg8: memref<1x1xf32, #tpu.memory_space<vmem>>, %arg9: memref<2x128xf32, #tpu.memory_space<vmem>>, %arg10: memref<1x128xf32, #tpu.memory_space<vmem>>) attributes {dimension_semantics = [], scalar_prefetch = 0 : i64, scratch_operands = 0 : i64, tpu.core_type = #tpu.core_type<tc>} {
    %c0 = arith.constant 0 : index
    %c0_0 = arith.constant 0 : index
    %0 = vector.load %arg0[%c0, %c0_0] : memref<1x160xf32, #tpu.memory_space<vmem>>, vector<1x160xf32>
    %c0_1 = arith.constant 0 : index
    %c0_2 = arith.constant 0 : index
    %1 = vector.load %arg3[%c0_1, %c0_2] : memref<160x512xf32, #tpu.memory_space<vmem>>, vector<160x512xf32>
    %cst = arith.constant dense<0.000000e+00> : vector<1x512xf32>
    %2 = tpu.matmul %0, %1, %cst {dimension_numbers = #tpu.dot_dimension_numbers<[1], [0], [0], [1], [0, 0, 1, 1], [], []>} : vector<1x160xf32>, vector<160x512xf32>, vector<1x512xf32> -> vector<1x512xf32>
    %c0_3 = arith.constant 0 : index
    %c0_4 = arith.constant 0 : index
    %3 = vector.load %arg4[%c0_3, %c0_4] : memref<1x512xf32, #tpu.memory_space<vmem>>, vector<1x512xf32>
    %4 = arith.addf %2, %3 : vector<1x512xf32>
    %c0_5 = arith.constant 0 : index
    %c0_6 = arith.constant 0 : index
    %5 = vector.load %arg2[%c0_5, %c0_6] : memref<1x128xf32, #tpu.memory_space<vmem>>, vector<1x128xf32>
    %c0_7 = arith.constant 0 : index
    %c0_8 = arith.constant 0 : index
    %6 = vector.load %arg1[%c0_7, %c0_8] : memref<1x32xf32, #tpu.memory_space<vmem>>, vector<1x32xf32>
    %7 = vector.extract_strided_slice %4 {offsets = [0, 0], sizes = [1, 128], strides = [1, 1]} : vector<1x512xf32> to vector<1x128xf32>
    %8 = arith.negf %7 : vector<1x128xf32>
    %9 = math.exp %8 : vector<1x128xf32>
    %cst_9 = arith.constant 1.000000e+00 : f32
    %10 = vector.broadcast %cst_9 : f32 to vector<1x128xf32>
    %11 = arith.addf %10, %9 : vector<1x128xf32>
    %12 = arith.divf %10, %11 : vector<1x128xf32>
    %13 = vector.extract_strided_slice %4 {offsets = [0, 128], sizes = [1, 128], strides = [1, 1]} : vector<1x512xf32> to vector<1x128xf32>
    %14 = arith.negf %13 : vector<1x128xf32>
    %15 = math.exp %14 : vector<1x128xf32>
    %cst_10 = arith.constant 1.000000e+00 : f32
    %16 = vector.broadcast %cst_10 : f32 to vector<1x128xf32>
    %17 = arith.addf %16, %15 : vector<1x128xf32>
    %18 = arith.divf %16, %17 : vector<1x128xf32>
    %19 = vector.extract_strided_slice %4 {offsets = [0, 256], sizes = [1, 128], strides = [1, 1]} : vector<1x512xf32> to vector<1x128xf32>
    %20 = math.tanh %19 : vector<1x128xf32>
    %21 = vector.extract_strided_slice %4 {offsets = [0, 384], sizes = [1, 128], strides = [1, 1]} : vector<1x512xf32> to vector<1x128xf32>
    %22 = arith.negf %21 : vector<1x128xf32>
    %23 = math.exp %22 : vector<1x128xf32>
    %cst_11 = arith.constant 1.000000e+00 : f32
    %24 = vector.broadcast %cst_11 : f32 to vector<1x128xf32>
    %25 = arith.addf %24, %23 : vector<1x128xf32>
    %26 = arith.divf %24, %25 : vector<1x128xf32>
    %27 = arith.mulf %18, %5 : vector<1x128xf32>
    %28 = arith.mulf %12, %20 : vector<1x128xf32>
    %29 = arith.addf %27, %28 : vector<1x128xf32>
    %30 = math.tanh %29 : vector<1x128xf32>
    %31 = arith.mulf %26, %30 : vector<1x128xf32>
    %c0_12 = arith.constant 0 : index
    %c0_13 = arith.constant 0 : index
    %32 = vector.load %arg5[%c0_12, %c0_13] : memref<32x128xf32, #tpu.memory_space<vmem>>, vector<32x128xf32>
    %cst_14 = arith.constant dense<0.000000e+00> : vector<1x128xf32>
    %33 = tpu.matmul %6, %32, %cst_14 {dimension_numbers = #tpu.dot_dimension_numbers<[1], [0], [0], [1], [0, 0, 1, 1], [], []>} : vector<1x32xf32>, vector<32x128xf32>, vector<1x128xf32> -> vector<1x128xf32>
    %34 = arith.mulf %33, %31 : vector<1x128xf32>
    %c0_15 = arith.constant 0 : index
    %c0_16 = arith.constant 0 : index
    %35 = vector.load %arg6[%c0_15, %c0_16] : memref<128x128xf32, #tpu.memory_space<vmem>>, vector<128x128xf32>
    %cst_17 = arith.constant dense<0.000000e+00> : vector<1x128xf32>
    %36 = tpu.matmul %34, %35, %cst_17 {dimension_numbers = #tpu.dot_dimension_numbers<[1], [0], [0], [1], [0, 0, 1, 1], [], []>} : vector<1x128xf32>, vector<128x128xf32>, vector<1x128xf32> -> vector<1x128xf32>
    %c0_18 = arith.constant 0 : index
    %c0_19 = arith.constant 0 : index
    %37 = vector.load %arg7[%c0_18, %c0_19] : memref<1x128xf32, #tpu.memory_space<vmem>>, vector<1x128xf32>
    %38 = arith.mulf %31, %37 : vector<1x128xf32>
    %cst_20 = arith.constant dense<0.000000e+00> : vector<1xf32>
    %39 = vector.multi_reduction <add>, %38, %cst_20 [1] : vector<1x128xf32> to vector<1xf32>
    %40 = vector.shape_cast %39 : vector<1xf32> to vector<1x1xf32>
    %c0_21 = arith.constant 0 : index
    %c0_22 = arith.constant 0 : index
    %41 = vector.load %arg8[%c0_21, %c0_22] : memref<1x1xf32, #tpu.memory_space<vmem>>, vector<1x1xf32>
    %42 = arith.addf %40, %41 : vector<1x1xf32>
    %43 = tpu.iota {dimensions = array<i32: 1>} : vector<1x128xi32>
    %c8_i32 = arith.constant 8 : i32
    %44 = vector.broadcast %c8_i32 : i32 to vector<1x128xi32>
    %45 = arith.cmpi slt, %43, %44 : vector<1x128xi32>
    %cst_23 = arith.constant 0xFF800000 : f32
    %46 = vector.broadcast %cst_23 : f32 to vector<1x128xf32>
    %47 = arith.select %45, %36, %46 : vector<1x128xi1>, vector<1x128xf32>
    %cst_24 = arith.constant dense<0xFF800000> : vector<1xf32>
    %48 = vector.multi_reduction <maximumf>, %47, %cst_24 [1] : vector<1x128xf32> to vector<1xf32>
    %49 = vector.shape_cast %48 : vector<1xf32> to vector<1x1xf32>
    %50 = vector.broadcast %49 : vector<1x1xf32> to vector<1x128xf32>
    %51 = arith.subf %47, %50 : vector<1x128xf32>
    %52 = math.exp %51 : vector<1x128xf32>
    %cst_25 = arith.constant dense<0.000000e+00> : vector<1xf32>
    %53 = vector.multi_reduction <add>, %52, %cst_25 [1] : vector<1x128xf32> to vector<1xf32>
    %54 = vector.shape_cast %53 : vector<1xf32> to vector<1x1xf32>
    %55 = vector.broadcast %54 : vector<1x1xf32> to vector<1x128xf32>
    %56 = arith.divf %52, %55 : vector<1x128xf32>
    %c8_i32_26 = arith.constant 8 : i32
    %57 = vector.broadcast %c8_i32_26 : i32 to vector<1x128xi32>
    %58 = arith.cmpi eq, %43, %57 : vector<1x128xi32>
    %59 = vector.shape_cast %42 : vector<1x1xf32> to vector<1x1xf32>
    %60 = vector.broadcast %59 : vector<1x1xf32> to vector<1x128xf32>
    %61 = arith.select %58, %60, %56 : vector<1x128xi1>, vector<1x128xf32>
    %c0_27 = arith.constant 0 : index
    %c0_28 = arith.constant 0 : index
    %62 = vector.load %arg9[%c0_27, %c0_28] : memref<2x128xf32, #tpu.memory_space<vmem>>, vector<1x128xf32>
    tpu.vector_store %arg9[%c0_27, %c0_28], %31 {strides = array<i32>} : memref<2x128xf32, #tpu.memory_space<vmem>>, vector<1x128xf32>,
    %c1 = arith.constant 1 : index
    %c0_29 = arith.constant 0 : index
    %63 = vector.load %arg9[%c1, %c0_29] : memref<2x128xf32, #tpu.memory_space<vmem>>, vector<1x128xf32>
    tpu.vector_store %arg9[%c1, %c0_29], %29 {strides = array<i32>} : memref<2x128xf32, #tpu.memory_space<vmem>>, vector<1x128xf32>,
    %c0_30 = arith.constant 0 : index
    %c0_31 = arith.constant 0 : index
    %64 = vector.load %arg10[%c0_30, %c0_31] : memref<1x128xf32, #tpu.memory_space<vmem>>, vector<1x128xf32>
    tpu.vector_store %arg10[%c0_30, %c0_31], %61 {strides = array<i32>} : memref<1x128xf32, #tpu.memory_space<vmem>>, vector<1x128xf32>,
    return
  }
}

</mosaic_0001>

<llo_original>
// kernel: _worker_forward_jit.1
$region0: #{_worker_forward_jit.1}
  #allocation0 [shape = 'u32[]', space=smem, size = 0x4, offset = 0x4, fixed_abs, tag = 'smem constant byte address 0x4 - core index']
  #allocation1 [shape = 'u32[144,128]{1,0:T(1,128)}', space=vmem, size = 0x12000, scoped, tag = 'internal scratch']
  #allocation2 [shape = 'f32[1,1]{1,0:T(1,128)S(1)}', space=vmem, size = 0x200, scoped, tag = 'scoped memory for _worker_forward_jit.1']
  %s0 = inlined_call_operand.vmem [shape: f32[1,160], index: 0, kind: input, shape index: {}]
  %s1 = inlined_call_operand.vmem [shape: f32[1,32], index: 1, kind: input, shape index: {}]
  %s2 = inlined_call_operand.vmem [shape: f32[1,128], index: 2, kind: input, shape index: {}]
  %s3 = inlined_call_operand.hbm [shape: f32[160,512], index: 3, kind: input, shape index: {}]
  %s4 = inlined_call_operand.vmem [shape: f32[1,512], index: 4, kind: input, shape index: {}]
  %s5 = inlined_call_operand.hbm [shape: f32[32,128], index: 5, kind: input, shape index: {}]
  %s6 = inlined_call_operand.hbm [shape: f32[128,128], index: 6, kind: input, shape index: {}]
  %s7 = inlined_call_operand.vmem [shape: f32[1,128], index: 7, kind: input, shape index: {}]
  %s8 = inlined_call_operand.<no memory space> [shape: f32[1,1], index: 8, kind: input, shape index: {}]
  %s9 = inlined_call_operand.vmem [shape: f32[2,128], index: 9, kind: output, shape index: {0}]
  %s10 = inlined_call_operand.vmem [shape: f32[1,128], index: 10, kind: output, shape index: {1}]
  %11 = xla_tuple %s9, %s10
  %s12 = sld [smem:[#allocation0]]
  $region66: #{_worker_forward_jit.1} parent=0
    _
  %s14 = ssub.s32 1, %s12
  %s15 = scalar_select 0, %s14, %s12
  %v16 = vstv %s8
  %17 = vst [vmem:[#allocation2] sm:$0x1] %v16
  $region1: #{_worker_forward_jit.1} parent=0
    #allocation3 [shape = 'u8[327680]{0}', space=vmem, size = 0x50000, scoped, tag = 'input window, operand 3, single buffered']
    #allocation4 [shape = 's32[1]{0}', space=sflag, size = 0x4, scoped, tag = 'scoped memory for _worker_forward_jit.1']
    #allocation5 [shape = 'u8[16384]{0}', space=vmem, size = 0x4000, scoped, tag = 'input window, operand 5, single buffered']
    #allocation6 [shape = 's32[1]{0}', space=sflag, size = 0x4, scoped, tag = 'scoped memory for _worker_forward_jit.1']
    #allocation7 [shape = 'u8[65536]{0}', space=vmem, size = 0x10000, scoped, tag = 'input window, operand 6, single buffered']
    %18 = vsyncpa [#allocation4], 0
    %19 = vsyncpa [#allocation6], 0
    // Predicated region
    $region2: #{_worker_forward_jit.1} parent=1 // pred_check
      _
    $region3: #{_worker_forward_jit.1} parent=1 // pred_check_branch
      %21 = sbr.rel (0) target = $region5
    $region4: #{_worker_forward_jit.1} parent=1 // pred_region
      _
    $region5: #{_worker_forward_jit.1} parent=1 // pred_fallthru
      _
    // Predicated region
    $region6: #{_worker_forward_jit.1} parent=1 // pred_check
      _
    $region7: #{_worker_forward_jit.1} parent=1 // pred_check_branch
      %23 = sbr.rel (0) target = $region9
    $region8: #{_worker_forward_jit.1} parent=1 // pred_region
      _
    $region9: #{_worker_forward_jit.1} parent=1 // pred_fallthru
      _
    // Predicated region
    $region10: #{_worker_forward_jit.1} parent=1 // pred_check
      _
    $region11: #{_worker_forward_jit.1} parent=1 // pred_check_branch
      %25 = sbr.rel (0) target = $region13
    $region12: #{_worker_forward_jit.1} parent=1 // pred_region
      _
    $region13: #{_worker_forward_jit.1} parent=1 // pred_fallthru
      _
    // Predicated region
    $region14: #{_worker_forward_jit.1} parent=1 // pred_check
      _
    $region15: #{_worker_forward_jit.1} parent=1 // pred_check_branch
      %27 = sbr.rel (0) target = $region17
    $region16: #{_worker_forward_jit.1} parent=1 // pred_region
      %s29 = ssub.s32 10240, 10240
      %30 = vsyncadd [#allocation4], %s29
      %s31 = sshll.u32 [#allocation3], 4
      %s32 = int_to_ptr.vmem [resolvable:$true] %s31
      %37 = dma.hbm_to_vmem [thread:$0]  %s3, 10240, %s32, [#allocation4], 512, 512, 32
    $region17: #{_worker_forward_jit.1} parent=1 // pred_fallthru
      _
    // Predicated region
    $region18: #{_worker_forward_jit.1} parent=1 // pred_check
      _
    $region19: #{_worker_forward_jit.1} parent=1 // pred_check_branch
      %39 = sbr.rel (0) target = $region21
    $region20: #{_worker_forward_jit.1} parent=1 // pred_region
      _
    $region21: #{_worker_forward_jit.1} parent=1 // pred_fallthru
      _
    // Predicated region
    $region22: #{_worker_forward_jit.1} parent=1 // pred_check
      _
    $region23: #{_worker_forward_jit.1} parent=1 // pred_check_branch
      %41 = sbr.rel (0) target = $region25
    $region24: #{_worker_forward_jit.1} parent=1 // pred_region
      %s43 = ssub.s32 512, 512
      %44 = vsyncadd [#allocation6], %s43
      %s45 = sshll.u32 [#allocation5], 4
      %s46 = int_to_ptr.vmem [resolvable:$true] %s45
      %51 = dma.hbm_to_vmem [thread:$0]  %s5, 512, %s46, [#allocation6], 128, 128, 8
    $region25: #{_worker_forward_jit.1} parent=1 // pred_fallthru
      _
    // Predicated region
    $region26: #{_worker_forward_jit.1} parent=1 // pred_check
      _
    $region27: #{_worker_forward_jit.1} parent=1 // pred_check_branch
      %53 = sbr.rel (0) target = $region29
    $region28: #{_worker_forward_jit.1} parent=1 // pred_region
      %s55 = ssub.s32 2048, 2048
      %56 = vsyncadd [#allocation6], %s55
      %s57 = sshll.u32 [#allocation7], 4
      %s58 = int_to_ptr.vmem [resolvable:$true] %s57
      %63 = dma.hbm_to_vmem [thread:$0]  %s6, 2048, %s58, [#allocation6], 128, 128, 8
    $region29: #{_worker_forward_jit.1} parent=1 // pred_fallthru
      _
    // Predicated region
    $region30: #{_worker_forward_jit.1} parent=1 // pred_check
      _
    $region31: #{_worker_forward_jit.1} parent=1 // pred_check_branch
      %65 = sbr.rel (0) target = $region33
    $region32: #{_worker_forward_jit.1} parent=1 // pred_region
      _
    $region33: #{_worker_forward_jit.1} parent=1 // pred_fallthru
      _
    // Predicated region
    $region34: #{_worker_forward_jit.1} parent=1 // pred_check
      _
    $region35: #{_worker_forward_jit.1} parent=1 // pred_check_branch
      %67 = sbr.rel (0) target = $region37
    $region36: #{_worker_forward_jit.1} parent=1 // pred_region
      _
    $region37: #{_worker_forward_jit.1} parent=1 // pred_fallthru
      _
    // Predicated region
    $region38: #{_worker_forward_jit.1} parent=1 // pred_check
      _
    $region39: #{_worker_forward_jit.1} parent=1 // pred_check_branch
      %69 = sbr.rel (0) target = $region41
    $region40: #{_worker_forward_jit.1} parent=1 // pred_region
      %70 = dma.done [#allocation4], 10240
    $region41: #{_worker_forward_jit.1} parent=1 // pred_fallthru
      _
    // Predicated region
    $region42: #{_worker_forward_jit.1} parent=1 // pred_check
      _
    $region43: #{_worker_forward_jit.1} parent=1 // pred_check_branch
      %72 = sbr.rel (0) target = $region45
    $region44: #{_worker_forward_jit.1} parent=1 // pred_region
      %73 = dma.done [#allocation6], 512
    $region45: #{_worker_forward_jit.1} parent=1 // pred_fallthru
      _
    // Predicated region
    $region46: #{_worker_forward_jit.1} parent=1 // pred_check
      _
    $region47: #{_worker_forward_jit.1} parent=1 // pred_check_branch
      %75 = sbr.rel (0) target = $region49
    $region48: #{_worker_forward_jit.1} parent=1 // pred_region
      %76 = dma.done [#allocation6], 2048
    $region49: #{_worker_forward_jit.1} parent=1 // pred_fallthru
      _
    %v77 = vld [vmem:[%s0] sm:$0x3]
    %v78 = vld [vmem:[#allocation3] sm:$0xff]
    %v79 = vld [vmem:[#allocation3 + $0x8] sm:$0xff]
    %v80 = vld [vmem:[#allocation3 + $0x10] sm:$0xff]
    %v81 = vld [vmem:[#allocation3 + $0x18] sm:$0xff]
    %v82 = vld [vmem:[#allocation3 + $0x20] sm:$0xff]
    %v83 = vld [vmem:[#allocation3 + $0x28] sm:$0xff]
    %v84 = vld [vmem:[#allocation3 + $0x30] sm:$0xff]
    %v85 = vld [vmem:[#allocation3 + $0x38] sm:$0xff]
    %v86 = vld [vmem:[#allocation3 + $0x40] sm:$0xff]
    %v87 = vld [vmem:[#allocation3 + $0x48] sm:$0xff]
    %v88 = vld [vmem:[#allocation3 + $0x50] sm:$0xff]
    %v89 = vld [vmem:[#allocation3 + $0x58] sm:$0xff]
    %v90 = vld [vmem:[#allocation3 + $0x60] sm:$0xff]
    %v91 = vld [vmem:[#allocation3 + $0x68] sm:$0xff]
    %v92 = vld [vmem:[#allocation3 + $0x70] sm:$0xff]
    %v93 = vld [vmem:[#allocation3 + $0x78] sm:$0xff]
    %v94 = vld [vmem:[#allocation3 + $0x80] sm:$0xff]
    %v95 = vld [vmem:[#allocation3 + $0x88] sm:$0xff]
    %v96 = vld [vmem:[#allocation3 + $0x90] sm:$0xff]
    %v97 = vld [vmem:[#allocation3 + $0x98] sm:$0xff]
    %v98 = vld [vmem:[#allocation3 + $0xa0] sm:$0xff]
    %v99 = vld [vmem:[#allocation3 + $0xa8] sm:$0xff]
    %v100 = vld [vmem:[#allocation3 + $0xb0] sm:$0xff]
    %v101 = vld [vmem:[#allocation3 + $0xb8] sm:$0xff]
    %v102 = vld [vmem:[#allocation3 + $0xc0] sm:$0xff]
    %v103 = vld [vmem:[#allocation3 + $0xc8] sm:$0xff]
    %v104 = vld [vmem:[#allocation3 + $0xd0] sm:$0xff]
    %v105 = vld [vmem:[#allocation3 + $0xd8] sm:$0xff]
    %v106 = vld [vmem:[#allocation3 + $0xe0] sm:$0xff]
    %v107 = vld [vmem:[#allocation3 + $0xe8] sm:$0xff]
    %v108 = vld [vmem:[#allocation3 + $0xf0] sm:$0xff]
    %v109 = vld [vmem:[#allocation3 + $0xf8] sm:$0xff]
    %v110 = vld [vmem:[#allocation3 + $0x100] sm:$0xff]
    %v111 = vld [vmem:[#allocation3 + $0x108] sm:$0xff]
    %v112 = vld [vmem:[#allocation3 + $0x110] sm:$0xff]
    %v113 = vld [vmem:[#allocation3 + $0x118] sm:$0xff]
    %v114 = vld [vmem:[#allocation3 + $0x120] sm:$0xff]
    %v115 = vld [vmem:[#allocation3 + $0x128] sm:$0xff]
    %v116 = vld [vmem:[#allocation3 + $0x130] sm:$0xff]
    %v117 = vld [vmem:[#allocation3 + $0x138] sm:$0xff]
    %v118 = vld [vmem:[#allocation3 + $0x140] sm:$0xff]
    %v119 = vld [vmem:[#allocation3 + $0x148] sm:$0xff]
    %v120 = vld [vmem:[#allocation3 + $0x150] sm:$0xff]
    %v121 = vld [vmem:[#allocation3 + $0x158] sm:$0xff]
    %v122 = vld [vmem:[#allocation3 + $0x160] sm:$0xff]
    %v123 = vld [vmem:[#allocation3 + $0x168] sm:$0xff]
    %v124 = vld [vmem:[#allocation3 + $0x170] sm:$0xff]
    %v125 = vld [vmem:[#allocation3 + $0x178] sm:$0xff]
    %v126 = vld [vmem:[#allocation3 + $0x180] sm:$0xff]
    %v127 = vld [vmem:[#allocation3 + $0x188] sm:$0xff]
    %v128 = vld [vmem:[#allocation3 + $0x190] sm:$0xff]
    %v129 = vld [vmem:[#allocation3 + $0x198] sm:$0xff]
    %v130 = vld [vmem:[#allocation3 + $0x1a0] sm:$0xff]
    %v131 = vld [vmem:[#allocation3 + $0x1a8] sm:$0xff]
    %v132 = vld [vmem:[#allocation3 + $0x1b0] sm:$0xff]
    %v133 = vld [vmem:[#allocation3 + $0x1b8] sm:$0xff]
    %v134 = vld [vmem:[#allocation3 + $0x1c0] sm:$0xff]
    %v135 = vld [vmem:[#allocation3 + $0x1c8] sm:$0xff]
    %v136 = vld [vmem:[#allocation3 + $0x1d0] sm:$0xff]
    %v137 = vld [vmem:[#allocation3 + $0x1d8] sm:$0xff]
    %v138 = vld [vmem:[#allocation3 + $0x1e0] sm:$0xff]
    %v139 = vld [vmem:[#allocation3 + $0x1e8] sm:$0xff]
    %v140 = vld [vmem:[#allocation3 + $0x1f0] sm:$0xff]
    %v141 = vld [vmem:[#allocation3 + $0x1f8] sm:$0xff]
    %v142 = vld [vmem:[#allocation3 + $0x200] sm:$0xff]
    %v143 = vld [vmem:[#allocation3 + $0x208] sm:$0xff]
    %v144 = vld [vmem:[#allocation3 + $0x210] sm:$0xff]
    %v145 = vld [vmem:[#allocation3 + $0x218] sm:$0xff]
    %v146 = vld [vmem:[#allocation3 + $0x220] sm:$0xff]
    %v147 = vld [vmem:[#allocation3 + $0x228] sm:$0xff]
    %v148 = vld [vmem:[#allocation3 + $0x230] sm:$0xff]
    %v149 = vld [vmem:[#allocation3 + $0x238] sm:$0xff]
    %v150 = vld [vmem:[#allocation3 + $0x240] sm:$0xff]
    %v151 = vld [vmem:[#allocation3 + $0x248] sm:$0xff]
    %v152 = vld [vmem:[#allocation3 + $0x250] sm:$0xff]
    %v153 = vld [vmem:[#allocation3 + $0x258] sm:$0xff]
    %v154 = vld [vmem:[#allocation3 + $0x260] sm:$0xff]
    %v155 = vld [vmem:[#allocation3 + $0x268] sm:$0xff]
    %v156 = vld [vmem:[#allocation3 + $0x270] sm:$0xff]
    %v157 = vld [vmem:[#allocation3 + $0x278] sm:$0xff]
    %v158 = vld [vmem:[%s4] sm:$0xf]
    %v160 = vlaneseq
    %v161 = vshrl.u32 %v160, 7
    %v162 = vsub.s32 0, %v161
    %v163 = vrot.slane %v77, %v162
    %v164 = vlaneseq
    %v165 = vshrl.u32 %v164, 7
    %v166 = vsub.s32 1, %v165
    %v167 = vrot.slane %v77, %v166
    %v170 = vlaneseq
    %v171 = vshrl.u32 %v170, 7
    %v172 = vsub.s32 0, %v171
    %v173 = vrot.slane %v158, %v172
    %v174 = vlaneseq
    %v175 = vshrl.u32 %v174, 7
    %v176 = vsub.s32 1, %v175
    %v177 = vrot.slane %v158, %v176
    %v178 = vlaneseq
    %v179 = vshrl.u32 %v178, 7
    %v180 = vsub.s32 2, %v179
    %v181 = vrot.slane %v158, %v180
    %v182 = vlaneseq
    %v183 = vshrl.u32 %v182, 7
    %v184 = vsub.s32 3, %v183
    %v185 = vrot.slane %v158, %v184
    %vm190 = vcmask 261120
    %v191 = vsel %vm190, %v167, 0
    %193 = vmatprep.subr.mxu0 %v79
    %194 = vmatpush1.msra.mxu0 %v78
    %195 = vmatprep.subr.mxu0 %v83
    %196 = vmatpush1.msra.mxu0 %v82
    %197 = vmatprep.subr.mxu0 %v87
    %198 = vmatpush1.msra.mxu0 %v86
    %199 = vmatprep.subr.mxu0 %v91
    %200 = vmatpush1.msra.mxu0 %v90
    %201 = vmatprep.subr.mxu0 %v95
    %202 = vmatpush1.msra.mxu0 %v94
    %203 = vmatprep.subr.mxu0 %v99
    %204 = vmatpush1.msra.mxu0 %v98
    %205 = vmatprep.subr.mxu0 %v103
    %206 = vmatpush1.msra.mxu0 %v102
    %207 = vmatprep.subr.mxu0 %v107
    %208 = vmatpush1.msra.mxu0 %v106
    %209 = vmatprep.subr.mxu0 %v111
    %210 = vmatpush1.msra.mxu0 %v110
    %211 = vmatprep.subr.mxu0 %v115
    %212 = vmatpush1.msra.mxu0 %v114
    %213 = vmatprep.subr.mxu0 %v119
    %214 = vmatpush1.msra.mxu0 %v118
    %215 = vmatprep.subr.mxu0 %v123
    %216 = vmatpush1.msra.mxu0 %v122
    %217 = vmatprep.subr.mxu0 %v127
    %218 = vmatpush1.msra.mxu0 %v126
    %219 = vmatprep.subr.mxu0 %v131
    %220 = vmatpush1.msra.mxu0 %v130
    %221 = vmatprep.subr.mxu0 %v135
    %222 = vmatpush1.msra.mxu0 %v134
    %223 = vmatprep.subr.mxu0 %v139
    %224 = vmatpush1.msra.mxu0 %v138
    %225 = vmatprep.subr.mxu0 %v143
    %226 = vmatpush1.msra.mxu0 %v142
    %227 = vmatprep.subr.mxu0 %v147
    %228 = vmatpush1.msra.mxu0 %v146
    %229 = vmatprep.subr.mxu0 %v151
    %230 = vmatpush1.msra.mxu0 %v150
    %231 = vmatprep.subr.mxu0 %v155
    %232 = vmatpush1.msra.mxu0 %v154
    %233 = vmatprep.subr.mxu0 0.0
    %234 = vmatpush1.msra.mxu0 0.0
    %235 = vmatprep.subr.mxu0 0.0
    %236 = vmatpush1.msra.mxu0 0.0
    %237 = vmatprep.subr.mxu0 0.0
    %238 = vmatpush1.msra.mxu0 0.0
    %239 = vmatprep.subr.mxu0 0.0
    %240 = vmatpush1.msra.mxu0 0.0
    %241 = vmatprep.subr.mxu0 0.0
    %242 = vmatpush1.msra.mxu0 0.0
    %243 = vmatprep.subr.mxu0 0.0
    %244 = vmatpush1.msra.mxu0 0.0
    %245 = vmatprep.subr.mxu0 0.0
    %246 = vmatpush1.msra.mxu0 0.0
    %247 = vmatprep.subr.mxu0 0.0
    %248 = vmatpush1.msra.mxu0 0.0
    %249 = vmatprep.subr.mxu0 0.0
    %250 = vmatpush1.msra.mxu0 0.0
    %251 = vmatprep.subr.mxu0 0.0
    %252 = vmatpush1.msra.mxu0 0.0
    %253 = vmatprep.subr.mxu0 0.0
    %254 = vmatpush1.msra.mxu0 0.0
    %255 = vmatprep.subr.mxu0 0.0
    %256 = vmatpush1.msra.mxu0 0.0
    %257 = vmatprep.mubr.f32.mxu0 %v191
    %258 = vmatmul.mubr.f32.gmra.mrb[0].mxu0 %v163
    %v259 = vpop.f32.mrb[0].mxu0
    %v260 = vadd.f32 %v173, %v259
    %v261 = vpop.f32.mrb[0].mxu0
    %v262 = vadd.f32 %v177, %v261
    %263 = vdwg.mxu0
    %264 = vmatprep.subr.mxu0 %v81
    %265 = vmatpush1.msra.mxu0 %v80
    %266 = vmatprep.subr.mxu0 %v85
    %267 = vmatpush1.msra.mxu0 %v84
    %268 = vmatprep.subr.mxu0 %v89
    %269 = vmatpush1.msra.mxu0 %v88
    %270 = vmatprep.subr.mxu0 %v93
    %271 = vmatpush1.msra.mxu0 %v92
    %272 = vmatprep.subr.mxu0 %v97
    %273 = vmatpush1.msra.mxu0 %v96
    %274 = vmatprep.subr.mxu0 %v101
    %275 = vmatpush1.msra.mxu0 %v100
    %276 = vmatprep.subr.mxu0 %v105
    %277 = vmatpush1.msra.mxu0 %v104
    %278 = vmatprep.subr.mxu0 %v109
    %279 = vmatpush1.msra.mxu0 %v108
    %280 = vmatprep.subr.mxu0 %v113
    %281 = vmatpush1.msra.mxu0 %v112
    %282 = vmatprep.subr.mxu0 %v117
    %283 = vmatpush1.msra.mxu0 %v116
    %284 = vmatprep.subr.mxu0 %v121
    %285 = vmatpush1.msra.mxu0 %v120
    %286 = vmatprep.subr.mxu0 %v125
    %287 = vmatpush1.msra.mxu0 %v124
    %288 = vmatprep.subr.mxu0 %v129
    %289 = vmatpush1.msra.mxu0 %v128
    %290 = vmatprep.subr.mxu0 %v133
    %291 = vmatpush1.msra.mxu0 %v132
    %292 = vmatprep.subr.mxu0 %v137
    %293 = vmatpush1.msra.mxu0 %v136
    %294 = vmatprep.subr.mxu0 %v141
    %295 = vmatpush1.msra.mxu0 %v140
    %296 = vmatprep.subr.mxu0 %v145
    %297 = vmatpush1.msra.mxu0 %v144
    %298 = vmatprep.subr.mxu0 %v149
    %299 = vmatpush1.msra.mxu0 %v148
    %300 = vmatprep.subr.mxu0 %v153
    %301 = vmatpush1.msra.mxu0 %v152
    %302 = vmatprep.subr.mxu0 %v157
    %303 = vmatpush1.msra.mxu0 %v156
    %304 = vmatprep.subr.mxu0 0.0
    %305 = vmatpush1.msra.mxu0 0.0
    %306 = vmatprep.subr.mxu0 0.0
    %307 = vmatpush1.msra.mxu0 0.0
    %308 = vmatprep.subr.mxu0 0.0
    %309 = vmatpush1.msra.mxu0 0.0
    %310 = vmatprep.subr.mxu0 0.0
    %311 = vmatpush1.msra.mxu0 0.0
    %312 = vmatprep.subr.mxu0 0.0
    %313 = vmatpush1.msra.mxu0 0.0
    %314 = vmatprep.subr.mxu0 0.0
    %315 = vmatpush1.msra.mxu0 0.0
    %316 = vmatprep.subr.mxu0 0.0
    %317 = vmatpush1.msra.mxu0 0.0
    %318 = vmatprep.subr.mxu0 0.0
    %319 = vmatpush1.msra.mxu0 0.0
    %320 = vmatprep.subr.mxu0 0.0
    %321 = vmatpush1.msra.mxu0 0.0
    %322 = vmatprep.subr.mxu0 0.0
    %323 = vmatpush1.msra.mxu0 0.0
    %324 = vmatprep.subr.mxu0 0.0
    %325 = vmatpush1.msra.mxu0 0.0
    %326 = vmatprep.subr.mxu0 0.0
    %327 = vmatpush1.msra.mxu0 0.0
    %328 = vmatprep.mubr.f32.mxu0 %v191
    %329 = vmatmul.mubr.f32.gmra.mrb[0].mxu0 %v163
    %v330 = vpop.f32.mrb[0].mxu0
    %v331 = vadd.f32 %v181, %v330
    %v332 = vpop.f32.mrb[0].mxu0
    %v333 = vadd.f32 %v185, %v332
    %334 = vdwg.mxu0
    %v335 = vld [vmem:[%s2] sm:$0x1]
    %v336 = vld [vmem:[%s1] sm:$0x1]
    %v337 = vxor.u32 %v260, 2147483648
    %v338 = vmul.f32 %v337, 1.442695
    %v339 = vpow.pop %v338
    %v340 = vadd.f32 %v339, 1.0
    %v341 = vrcp.pop %v340
    %v342 = vmul.f32 1.0, %v341
    %v343 = vxor.u32 %v262, 2147483648
    %v344 = vmul.f32 %v343, 1.442695
    %v345 = vpow.pop %v344
    %v346 = vadd.f32 %v345, 1.0
    %v347 = vrcp.pop %v346
    %v348 = vmul.f32 1.0, %v347
    %v349 = vtanh.pop %v331
    %v350 = vxor.u32 %v333, 2147483648
    %v351 = vmul.f32 %v350, 1.442695
    %v352 = vpow.pop %v351
    %v353 = vadd.f32 %v352, 1.0
    %v354 = vrcp.pop %v353
    %v355 = vmul.f32 1.0, %v354
    %v356 = vmul.f32 %v348, %v335
    %v357 = vmul.f32 %v342, %v349
    %v358 = vadd.f32 %v356, %v357
    %v359 = vtanh.pop %v358
    %v360 = vmul.f32 %v355, %v359
    %v361 = vld [vmem:[#allocation5] sm:$0xff]
    %v362 = vld [vmem:[#allocation5 + $0x8] sm:$0xff]
    %v363 = vld [vmem:[#allocation5 + $0x10] sm:$0xff]
    %v364 = vld [vmem:[#allocation5 + $0x18] sm:$0xff]
    %v366 = vsel %vm190, %v336, 0
    %368 = vmatprep.subr.mxu0 0.0
    %369 = vmatpush1.msra.mxu0 %v361
    %370 = vmatprep.subr.mxu0 0.0
    %371 = vmatpush1.msra.mxu0 %v362
    %372 = vmatprep.subr.mxu0 0.0
    %373 = vmatpush1.msra.mxu0 %v363
    %374 = vmatprep.subr.mxu0 0.0
    %375 = vmatpush1.msra.mxu0 %v364
    %376 = vmatprep.subr.mxu0 0.0
    %377 = vmatpush1.msra.mxu0 0.0
    %378 = vmatprep.subr.mxu0 0.0
    %379 = vmatpush1.msra.mxu0 0.0
    %380 = vmatprep.subr.mxu0 0.0
    %381 = vmatpush1.msra.mxu0 0.0
    %382 = vmatprep.subr.mxu0 0.0
    %383 = vmatpush1.msra.mxu0 0.0
    %384 = vmatprep.subr.mxu0 0.0
    %385 = vmatpush1.msra.mxu0 0.0
    %386 = vmatprep.subr.mxu0 0.0
    %387 = vmatpush1.msra.mxu0 0.0
    %388 = vmatprep.subr.mxu0 0.0
    %389 = vmatpush1.msra.mxu0 0.0
    %390 = vmatprep.subr.mxu0 0.0
    %391 = vmatpush1.msra.mxu0 0.0
    %392 = vmatprep.subr.mxu0 0.0
    %393 = vmatpush1.msra.mxu0 0.0
    %394 = vmatprep.subr.mxu0 0.0
    %395 = vmatpush1.msra.mxu0 0.0
    %396 = vmatprep.subr.mxu0 0.0
    %397 = vmatpush1.msra.mxu0 0.0
    %398 = vmatprep.subr.mxu0 0.0
    %399 = vmatpush1.msra.mxu0 0.0
    %400 = vmatprep.subr.mxu0 0.0
    %401 = vmatpush1.msra.mxu0 0.0
    %402 = vmatprep.subr.mxu0 0.0
    %403 = vmatpush1.msra.mxu0 0.0
    %404 = vmatprep.subr.mxu0 0.0
    %405 = vmatpush1.msra.mxu0 0.0
    %406 = vmatprep.subr.mxu0 0.0
    %407 = vmatpush1.msra.mxu0 0.0
    %408 = vmatprep.subr.mxu0 0.0
    %409 = vmatpush1.msra.mxu0 0.0
    %410 = vmatprep.subr.mxu0 0.0
    %411 = vmatpush1.msra.mxu0 0.0
    %412 = vmatprep.subr.mxu0 0.0
    %413 = vmatpush1.msra.mxu0 0.0
    %414 = vmatprep.subr.mxu0 0.0
    %415 = vmatpush1.msra.mxu0 0.0
    %416 = vmatprep.subr.mxu0 0.0
    %417 = vmatpush1.msra.mxu0 0.0
    %418 = vmatprep.subr.mxu0 0.0
    %419 = vmatpush1.msra.mxu0 0.0
    %420 = vmatprep.subr.mxu0 0.0
    %421 = vmatpush1.msra.mxu0 0.0
    %422 = vmatprep.subr.mxu0 0.0
    %423 = vmatpush1.msra.mxu0 0.0
    %424 = vmatprep.subr.mxu0 0.0
    %425 = vmatpush1.msra.mxu0 0.0
    %426 = vmatprep.subr.mxu0 0.0
    %427 = vmatpush1.msra.mxu0 0.0
    %428 = vmatprep.subr.mxu0 0.0
    %429 = vmatpush1.msra.mxu0 0.0
    %430 = vmatprep.subr.mxu0 0.0
    %431 = vmatpush1.msra.mxu0 0.0
    %432 = vmatprep.mubr.f32.mxu0 0.0
    %433 = vmatmul.mubr.f32.gmra.mrb[0].mxu0 %v366
    %v434 = vpop.f32.mrb[0].mxu0
    %v435 = vadd.f32 0.0, %v434
    %v436 = vpop.f32.mrb[0].mxu0
    %437 = vdwg.mxu0
    %v438 = vmul.f32 %v435, %v360
    %v439 = vld [vmem:[#allocation7] sm:$0xff]
    %v440 = vld [vmem:[#allocation7 + $0x8] sm:$0xff]
    %v441 = vld [vmem:[#allocation7 + $0x10] sm:$0xff]
    %v442 = vld [vmem:[#allocation7 + $0x18] sm:$0xff]
    %v443 = vld [vmem:[#allocation7 + $0x20] sm:$0xff]
    %v444 = vld [vmem:[#allocation7 + $0x28] sm:$0xff]
    %v445 = vld [vmem:[#allocation7 + $0x30] sm:$0xff]
    %v446 = vld [vmem:[#allocation7 + $0x38] sm:$0xff]
    %v447 = vld [vmem:[#allocation7 + $0x40] sm:$0xff]
    %v448 = vld [vmem:[#allocation7 + $0x48] sm:$0xff]
    %v449 = vld [vmem:[#allocation7 + $0x50] sm:$0xff]
    %v450 = vld [vmem:[#allocation7 + $0x58] sm:$0xff]
    %v451 = vld [vmem:[#allocation7 + $0x60] sm:$0xff]
    %v452 = vld [vmem:[#allocation7 + $0x68] sm:$0xff]
    %v453 = vld [vmem:[#allocation7 + $0x70] sm:$0xff]
    %v454 = vld [vmem:[#allocation7 + $0x78] sm:$0xff]
    %455 = vmatprep.subr.mxu0 0.0
    %456 = vmatpush1.msra.mxu0 %v439
    %457 = vmatprep.subr.mxu0 0.0
    %458 = vmatpush1.msra.mxu0 %v440
    %459 = vmatprep.subr.mxu0 0.0
    %460 = vmatpush1.msra.mxu0 %v441
    %461 = vmatprep.subr.mxu0 0.0
    %462 = vmatpush1.msra.mxu0 %v442
    %463 = vmatprep.subr.mxu0 0.0
    %464 = vmatpush1.msra.mxu0 %v443
    %465 = vmatprep.subr.mxu0 0.0
    %466 = vmatpush1.msra.mxu0 %v444
    %467 = vmatprep.subr.mxu0 0.0
    %468 = vmatpush1.msra.mxu0 %v445
    %469 = vmatprep.subr.mxu0 0.0
    %470 = vmatpush1.msra.mxu0 %v446
    %471 = vmatprep.subr.mxu0 0.0
    %472 = vmatpush1.msra.mxu0 %v447
    %473 = vmatprep.subr.mxu0 0.0
    %474 = vmatpush1.msra.mxu0 %v448
    %475 = vmatprep.subr.mxu0 0.0
    %476 = vmatpush1.msra.mxu0 %v449
    %477 = vmatprep.subr.mxu0 0.0
    %478 = vmatpush1.msra.mxu0 %v450
    %479 = vmatprep.subr.mxu0 0.0
    %480 = vmatpush1.msra.mxu0 %v451
    %481 = vmatprep.subr.mxu0 0.0
    %482 = vmatpush1.msra.mxu0 %v452
    %483 = vmatprep.subr.mxu0 0.0
    %484 = vmatpush1.msra.mxu0 %v453
    %485 = vmatprep.subr.mxu0 0.0
    %486 = vmatpush1.msra.mxu0 %v454
    %487 = vmatprep.subr.mxu0 0.0
    %488 = vmatpush1.msra.mxu0 0.0
    %489 = vmatprep.subr.mxu0 0.0
    %490 = vmatpush1.msra.mxu0 0.0
    %491 = vmatprep.subr.mxu0 0.0
    %492 = vmatpush1.msra.mxu0 0.0
    %493 = vmatprep.subr.mxu0 0.0
    %494 = vmatpush1.msra.mxu0 0.0
    %495 = vmatprep.subr.mxu0 0.0
    %496 = vmatpush1.msra.mxu0 0.0
    %497 = vmatprep.subr.mxu0 0.0
    %498 = vmatpush1.msra.mxu0 0.0
    %499 = vmatprep.subr.mxu0 0.0
    %500 = vmatpush1.msra.mxu0 0.0
    %501 = vmatprep.subr.mxu0 0.0
    %502 = vmatpush1.msra.mxu0 0.0
    %503 = vmatprep.subr.mxu0 0.0
    %504 = vmatpush1.msra.mxu0 0.0
    %505 = vmatprep.subr.mxu0 0.0
    %506 = vmatpush1.msra.mxu0 0.0
    %507 = vmatprep.subr.mxu0 0.0
    %508 = vmatpush1.msra.mxu0 0.0
    %509 = vmatprep.subr.mxu0 0.0
    %510 = vmatpush1.msra.mxu0 0.0
    %511 = vmatprep.subr.mxu0 0.0
    %512 = vmatpush1.msra.mxu0 0.0
    %513 = vmatprep.subr.mxu0 0.0
    %514 = vmatpush1.msra.mxu0 0.0
    %515 = vmatprep.subr.mxu0 0.0
    %516 = vmatpush1.msra.mxu0 0.0
    %517 = vmatprep.subr.mxu0 0.0
    %518 = vmatpush1.msra.mxu0 0.0
    %519 = vmatprep.mubr.f32.mxu0 0.0
    %520 = vmatmul.mubr.f32.gmra.mrb[0].mxu0 %v438
    %v521 = vpop.f32.mrb[0].mxu0
    %v522 = vadd.f32 0.0, %v521
    %v523 = vpop.f32.mrb[0].mxu0
    %524 = vdwg.mxu0
    %v525 = vld [vmem:[%s7] sm:$0x1]
    %v526 = vmul.f32 %v360, %v525
    %vm527 = vcmask 1040384
    %v528 = vsel %vm527, %v526, 0.0
    %529 = vadd.xlane.f32.xlu0 %v528
    %v530 = vpop.xlane.xlu0 %529
    %v531 = vld [vmem:[#allocation2] sm:$0x1]
    %v532 = vadd.f32 %v530, %v531
    %v533 = vlaneseq
    %v534 = vand.u32 %v533, 127
    %vm535 = vcmp.lt.s32.totalorder %v534, 8
    %v536 = vsel %vm535, %v522, -inf
    %v537 = vsel %vm527, %v536, -inf
    %538 = vmax.xlane.f32.xlu0 %v537
    %v539 = vpop.xlane.xlu0 %538
    %v540 = vsub.f32 %v536, %v539
    %v541 = vmul.f32 %v540, 1.442695
    %v542 = vpow.pop %v541
    %v543 = vsel %vm527, %v542, 0.0
    %544 = vadd.xlane.f32.xlu0 %v543
    %v545 = vpop.xlane.xlu0 %544
    %v546 = vrcp.pop %v545
    %v547 = vmul.f32 %v542, %v546
    %vm548 = vcmp.eq.s32.totalorder %v534, 8
    %550 = vset.pattern.permute.xlu0 0
    %551 = vperm.xlu0 %550, %v532
    %v552 = vpop.permute.xlu0 %551
    %v554 = vsel %vm548, %v552, %v547
    %555 = vst [vmem:[%s9] sm:$0x1] %v360
    %556 = vst [vmem:[%s9 + $0x1] sm:$0x1] %v358
    %557 = vst [vmem:[%s10] sm:$0x1] %v554
    // Predicated region
    $region50: #{_worker_forward_jit.1} parent=1 // pred_check
      _
    $region51: #{_worker_forward_jit.1} parent=1 // pred_check_branch
      %559 = sbr.rel (0) target = $region53
    $region52: #{_worker_forward_jit.1} parent=1 // pred_region
      _
    $region53: #{_worker_forward_jit.1} parent=1 // pred_fallthru
      _
    // Predicated region
    $region54: #{_worker_forward_jit.1} parent=1 // pred_check
      _
    $region55: #{_worker_forward_jit.1} parent=1 // pred_check_branch
      %561 = sbr.rel (0) target = $region57
    $region56: #{_worker_forward_jit.1} parent=1 // pred_region
      _
    $region57: #{_worker_forward_jit.1} parent=1 // pred_fallthru
      _
    // Predicated region
    $region58: #{_worker_forward_jit.1} parent=1 // pred_check
      _
    $region59: #{_worker_forward_jit.1} parent=1 // pred_check_branch
      %563 = sbr.rel (0) target = $region61
    $region60: #{_worker_forward_jit.1} parent=1 // pred_region
      _
    $region61: #{_worker_forward_jit.1} parent=1 // pred_fallthru
      _
    // Predicated region
    $region62: #{_worker_forward_jit.1} parent=1 // pred_check
      _
    $region63: #{_worker_forward_jit.1} parent=1 // pred_check_branch
      %565 = sbr.rel (0) target = $region65
    $region64: #{_worker_forward_jit.1} parent=1 // pred_region
      _
    $region65: #{_worker_forward_jit.1} parent=1 // pred_fallthru
      _
    %566 = vsyncpa [#allocation4], 1
    %567 = vsyncpa [#allocation6], 1

</llo_original>
